<compile_context>
chip_gen: v6e
topology: v6e:2x2x1
jax: 0.10.0
libtpu: 0.0.40
codegen_flags: <defaults>
</compile_context>

<pallas_src>
import jax
import jax.numpy as jnp
from jax import lax
from jax.experimental import pallas as pl
from jax.experimental.pallas import tpu as pltpu


def _cnn_kernel(x_ref, w1_ref, b1_ref, w2_ref, b2_ref, o_ref, h1p_ref):
    # x_ref:   (TB, L+2, 1)  f32   wrapper-added zero halo of 1 on each side of L
    # w1_ref:  (3, H)        f32   conv1 taps, w1[k, h] = torch_w1[h, 0, k]
    # b1_ref:  (1, H)        f32
    # w2_ref:  (3, H, H)     mxu dtype, w2[k, cin, cout] = torch_w2[cout, cin, k]
    # b2_ref:  (1, H)        f32
    # o_ref:   (TB, H)       f32
    # h1p_ref: (TB, L+2, H)  mxu-dtype VMEM scratch with zero halo rows
    TB = x_ref.shape[0]
    L = x_ref.shape[1] - 2
    H = b1_ref.shape[-1]

    x = x_ref[...]                       # (TB, L+2, 1); L lives in sublanes
    w1 = w1_ref[...]                     # (3, H)
    b1 = b1_ref[...]                     # (1, H)

    # ---- conv1 (Cin=1, k=3, pad=1) on the VPU: lane-splat taps, no relayout. --
    h1 = (x[:, 0:L, :] * w1[0][None, None, :]
          + x[:, 1:L + 1, :] * w1[1][None, None, :]
          + x[:, 2:L + 2, :] * w1[2][None, None, :]
          + b1[None, :, :])                                     # (TB, L, H) f32
    h1 = jnp.maximum(h1, 0.0)

    # ---- stage h1 once, cast once, single aligned full-block store. -----------
    # Halo rows must be (re)written each grid step: the scratch persists across
    # steps and each megacore TC owns its own uninitialized instance.
    zrow = jnp.zeros((TB, 1, H), h1p_ref.dtype)
    h1p_ref[...] = jnp.concatenate([zrow, h1.astype(h1p_ref.dtype), zrow], axis=1)

    # ---- conv2 (Cin=H, k=3, pad=1): three f32-accumulated MXU dots. -----------
    # Each dot reads a shifted L-window of the scratch directly (no slab copy).
    w2 = w2_ref[...]                                            # (3, H, H)
    b2 = b2_ref[...]                                            # (1, H)
    h2 = jnp.dot(h1p_ref[:, 0:L, :].reshape(TB * L, H), w2[0],
                 preferred_element_type=jnp.float32)
    h2 = h2 + jnp.dot(h1p_ref[:, 1:L + 1, :].reshape(TB * L, H), w2[1],
                      preferred_element_type=jnp.float32)
    h2 = h2 + jnp.dot(h1p_ref[:, 2:L + 2, :].reshape(TB * L, H), w2[2],
                      preferred_element_type=jnp.float32)
    h2 = jnp.maximum(h2 + b2, 0.0)                              # (TB*L, H) f32

    # ---- AdaptiveAvgPool1d(1), fused: mean over L with compile-time 1/L. ------
    # TODO(synk): for H < 128 a lane-dense (H, B) output layout would avoid the
    # masked vst writeback; skipped since the output volume here is tiny.
    o_ref[...] = jnp.sum(h2.reshape(TB, L, H), axis=1) * (1.0 / L)


def _vmem_budgets(vmem_limit_override=None):
    """Generation-aware (tile working-set budget, scoped VMEM limit) in bytes."""
    phys = None
    try:
        info = pltpu.get_tpu_info()
        for attr in ("vmem_capacity_bytes", "vmem_size_bytes", "vmem_bytes"):
            v = getattr(info, attr, None)
            if v:
                phys = int(v)
                break
    except Exception:
        phys = None
    if phys is None:
        phys = 64 << 20                        # conservative: v7x per-TC VMEM
    if phys >= (96 << 20):                     # v5e / v6e: 128 MiB physical
        tile_budget, vmem_limit = 40 << 20, 96 << 20
    else:                                      # v7x: 64 MiB per TensorCore
        tile_budget, vmem_limit = 18 << 20, 40 << 20
    if vmem_limit_override is not None:
        vmem_limit = vmem_limit_override
    return tile_budget, vmem_limit


def _bytes_per_batch_row(L, H, mxu_itemsize):
    """Conservative per-batch-row VMEM cost of one grid step."""
    x_in = (L + 2) * 128 * 4 * 2              # (.., L+2, 1) input, lane-padded, 2x buffered
    out = max(H, 128) * 4 * 2                 # output block, 2x buffered
    h1p = (L + 2) * H * mxu_itemsize          # zero-halo scratch (single instance)
    temps = 2 * L * H * 4                     # h1 / h2 f32 temporaries
    taps = 3 * L * H * mxu_itemsize           # tap-window loads (upper bound)
    return x_in + out + h1p + temps + taps


def _pick_batch_tile(B, L, H, mxu_itemsize, budget):
    """Sublane-multiple batch tile: >= ~2048 MXU M-rows per dot, grown into the
    generation-aware VMEM budget (fewer grid steps, better M amortization)."""
    row_bytes = _bytes_per_batch_row(L, H, mxu_itemsize)
    tb = -(-2048 // L)                         # ceil(2048 / L) rows target
    tb = max(8, ((tb + 7) // 8) * 8)
    while tb < 4096 and tb * 2 * row_bytes <= budget:
        tb *= 2                                # grow into available VMEM
    while tb > 8 and tb * row_bytes > budget:
        tb //= 2                               # shrink if target does not fit
    tb = max(8, (tb // 8) * 8)
    tb = min(tb, ((B + 7) // 8) * 8)           # never tile wider than the batch
    return max(tb, 8)


def cnn_classifier_forward(x, w1_torch, b1, w2_torch, b2, *,
                           mxu_dtype=jnp.bfloat16, batch_tile=None,
                           vmem_limit_bytes=None):
    """x: (B, L) f32. w*_torch in PyTorch Conv1d layout (Cout, Cin, K=3).

    mxu_dtype: dtype of the conv2 MXU inputs (bf16 default on all generations;
    accumulation is always f32). Returns (h, h) like the PyTorch module."""
    x = x.astype(jnp.float32)
    B, L = x.shape
    H = w1_torch.shape[0]

    tile_budget, vmem_limit = _vmem_budgets(vmem_limit_bytes)
    if batch_tile is None:
        batch_tile = _pick_batch_tile(B, L, H, jnp.dtype(mxu_dtype).itemsize,
                                      tile_budget)
    B_pad = ((B + batch_tile - 1) // batch_tile) * batch_tile

    # One-off layout plumbing on the XLA side: channels-last conv1 taps, per-tap
    # conv2 matrices (3, H, H), batch zero-pad, L halo of 1, trailing singleton
    # so the kernel sees L in sublanes (no in-kernel lane->sublane relayout).
    # NOTE: zero-padded batch rows compute relu(b1)-driven garbage that is
    # sliced off below; wasted compute only when B << batch_tile.
    w1_taps = w1_torch[:, 0, :].T.astype(jnp.float32)                   # (3, H)
    b1_k = b1.reshape(1, H).astype(jnp.float32)
    w2_taps = jnp.transpose(w2_torch, (2, 1, 0)).astype(mxu_dtype)      # (3, H, H)
    b2_k = b2.reshape(1, H).astype(jnp.float32)
    x_pad = jnp.pad(x, ((0, B_pad - B), (1, 1)))[:, :, None]            # (B_pad, L+2, 1)

    out = pl.pallas_call(
        _cnn_kernel,
        out_shape=jax.ShapeDtypeStruct((B_pad, H), jnp.float32),
        grid=(B_pad // batch_tile,),
        in_specs=[
            pl.BlockSpec((batch_tile, L + 2, 1), lambda i: (i, 0, 0)),
            pl.BlockSpec((3, H), lambda i: (0, 0)),
            pl.BlockSpec((1, H), lambda i: (0, 0)),
            pl.BlockSpec((3, H, H), lambda i: (0, 0, 0)),
            pl.BlockSpec((1, H), lambda i: (0, 0)),
        ],
        out_specs=pl.BlockSpec((batch_tile, H), lambda i: (i, 0)),
        scratch_shapes=[pltpu.VMEM((batch_tile, L + 2, H), mxu_dtype)],
        compiler_params=pltpu.CompilerParams(
            dimension_semantics=("parallel",),      # megacore split on v7x
            vmem_limit_bytes=vmem_limit,            # generation-aware
        ),
    )(x_pad, w1_taps, b1_k, w2_taps, b2_k)

    h = out[:B]
    return h, h


def _reference_forward(x, w1_torch, b1, w2_torch, b2):
    """Pure-JAX reference using lax.conv, mirroring the PyTorch NCW path."""
    xn = x[:, None, :]                                     # (B, 1, L)
    dn = ('NCW', 'OIW', 'NCW')
    h = lax.conv_general_dilated(xn, w1_torch, (1,), [(1, 1)], dimension_numbers=dn)
    h = jax.nn.relu(h + b1[None, :, None])
    h = lax.conv_general_dilated(h, w2_torch, (1,), [(1, 1)], dimension_numbers=dn)
    h = jax.nn.relu(h + b2[None, :, None])
    h = jnp.mean(h, axis=-1)                               # (B, H)
    return h, h


if __name__ == "__main__":
    B = 2
    input_size = 16   # L
    hidden_size = 32  # H
    output_size = 8   # only used by estimation_net (unused in forward)

    key = jax.random.PRNGKey(0)
    kx, k1, k2, k3, k4 = jax.random.split(key, 5)

    x = jax.random.normal(kx, (B, input_size), dtype=jnp.float32)
    # Conv1d(1, H, k=3, pad=1): weight (H, 1, 3), bias (H,)
    w1 = 0.1 * jax.random.normal(k1, (hidden_size, 1, 3), dtype=jnp.float32)
    b1 = 0.1 * jax.random.normal(k2, (hidden_size,), dtype=jnp.float32)
    # Conv1d(H, H, k=3, pad=1): weight (H, H, 3), bias (H,)
    w2 = 0.1 * jax.random.normal(k3, (hidden_size, hidden_size, 3), dtype=jnp.float32)
    b2 = 0.1 * jax.random.normal(k4, (hidden_size,), dtype=jnp.float32)

    # TODO(synk): estimation_net (Linear->ReLU->Linear) is defined in __init__ but
    # never called in CNNClassifier.forward, so it is not lowered here.

    ref, _ = _reference_forward(x, w1, b1, w2, b2)

    # f32 MXU-input path: tight check against the lax.conv reference.
    h32, _ = cnn_classifier_forward(x, w1, b1, w2, b2, mxu_dtype=jnp.float32)
    jax.block_until_ready(h32)
    assert h32.shape == (B, hidden_size)
    assert jnp.allclose(h32, ref, atol=1e-4, rtol=1e-4), "f32 path mismatch vs reference"

    # bf16 MXU-input / f32-accumulate path (default on all generations): loose check.
    hbf, hbf2 = cnn_classifier_forward(x, w1, b1, w2, b2)
    jax.block_until_ready(hbf)
    assert hbf.shape == (B, hidden_size)
    assert hbf2.shape == (B, hidden_size)
    assert jnp.allclose(hbf, ref, atol=5e-2, rtol=5e-2), "bf16 path mismatch vs reference"

    print("KERNEL_OK")
</pallas_src>

<mosaic_0001>
module attributes {stable_mosaic.version = 11 : i64} {
  func.func @_cnn_kernel(%arg0: i32, %arg1: memref<8x18x1xf32, #tpu.memory_space<vmem>>, %arg2: memref<3x32xf32, #tpu.memory_space<vmem>>, %arg3: memref<1x32xf32, #tpu.memory_space<vmem>>, %arg4: memref<3x32x32xf32, #tpu.memory_space<vmem>>, %arg5: memref<1x32xf32, #tpu.memory_space<vmem>>, %arg6: memref<8x32xf32, #tpu.memory_space<vmem>>, %arg7: memref<8x18x32xf32, #tpu.memory_space<vmem>>) attributes {dimension_semantics = [#tpu.dimension_semantics<parallel>], iteration_bounds = array<i64: 1>, scalar_prefetch = 0 : i64, scratch_operands = 1 : i64, tpu.core_type = #tpu.core_type<tc>, window_params = [{transform_indices = @transform_0, window_bounds = array<i64: 8, 18, 1>}, {pipeline_mode = #tpu.pipeline_mode<synchronous>, transform_indices = @transform_1, window_bounds = array<i64: 3, 32>}, {pipeline_mode = #tpu.pipeline_mode<synchronous>, transform_indices = @transform_2, window_bounds = array<i64: 1, 32>}, {pipeline_mode = #tpu.pipeline_mode<synchronous>, transform_indices = @transform_3, window_bounds = array<i64: 3, 32, 32>}, {pipeline_mode = #tpu.pipeline_mode<synchronous>, transform_indices = @transform_4, window_bounds = array<i64: 1, 32>}, {transform_indices = @transform_5, window_bounds = array<i64: 8, 32>}]} {
    %c0 = arith.constant 0 : index
    %c0_0 = arith.constant 0 : index
    %c0_1 = arith.constant 0 : index
    %0 = vector.load %arg1[%c0, %c0_0, %c0_1] : memref<8x18x1xf32, #tpu.memory_space<vmem>>, vector<8x18x1xf32>
    %c0_2 = arith.constant 0 : index
    %c0_3 = arith.constant 0 : index
    %1 = vector.load %arg2[%c0_2, %c0_3] : memref<3x32xf32, #tpu.memory_space<vmem>>, vector<3x32xf32>
    %c0_4 = arith.constant 0 : index
    %c0_5 = arith.constant 0 : index
    %2 = vector.load %arg3[%c0_4, %c0_5] : memref<1x32xf32, #tpu.memory_space<vmem>>, vector<1x32xf32>
    %3 = vector.extract_strided_slice %0 {offsets = [0, 0, 0], sizes = [8, 16, 1], strides = [1, 1, 1]} : vector<8x18x1xf32> to vector<8x16x1xf32>
    %4 = vector.extract_strided_slice %1 {offsets = [0, 0], sizes = [1, 32], strides = [1, 1]} : vector<3x32xf32> to vector<1x32xf32>
    %5 = vector.shape_cast %4 : vector<1x32xf32> to vector<32xf32>
    %6 = vector.shape_cast %5 : vector<32xf32> to vector<1x1x32xf32>
    %7 = vector.broadcast %3 : vector<8x16x1xf32> to vector<8x16x32xf32>
    %8 = vector.broadcast %6 : vector<1x1x32xf32> to vector<8x16x32xf32>
    %9 = arith.mulf %7, %8 : vector<8x16x32xf32>
    %10 = vector.extract_strided_slice %0 {offsets = [0, 1, 0], sizes = [8, 16, 1], strides = [1, 1, 1]} : vector<8x18x1xf32> to vector<8x16x1xf32>
    %11 = vector.extract_strided_slice %1 {offsets = [1, 0], sizes = [1, 32], strides = [1, 1]} : vector<3x32xf32> to vector<1x32xf32>
    %12 = vector.shape_cast %11 : vector<1x32xf32> to vector<32xf32>
    %13 = vector.shape_cast %12 : vector<32xf32> to vector<1x1x32xf32>
    %14 = vector.broadcast %10 : vector<8x16x1xf32> to vector<8x16x32xf32>
    %15 = vector.broadcast %13 : vector<1x1x32xf32> to vector<8x16x32xf32>
    %16 = arith.mulf %14, %15 : vector<8x16x32xf32>
    %17 = arith.addf %9, %16 : vector<8x16x32xf32>
    %18 = vector.extract_strided_slice %0 {offsets = [0, 2, 0], sizes = [8, 16, 1], strides = [1, 1, 1]} : vector<8x18x1xf32> to vector<8x16x1xf32>
    %19 = vector.extract_strided_slice %1 {offsets = [2, 0], sizes = [1, 32], strides = [1, 1]} : vector<3x32xf32> to vector<1x32xf32>
    %20 = vector.shape_cast %19 : vector<1x32xf32> to vector<32xf32>
    %21 = vector.shape_cast %20 : vector<32xf32> to vector<1x1x32xf32>
    %22 = vector.broadcast %18 : vector<8x16x1xf32> to vector<8x16x32xf32>
    %23 = vector.broadcast %21 : vector<1x1x32xf32> to vector<8x16x32xf32>
    %24 = arith.mulf %22, %23 : vector<8x16x32xf32>
    %25 = arith.addf %17, %24 : vector<8x16x32xf32>
    %26 = vector.shape_cast %2 : vector<1x32xf32> to vector<1x1x32xf32>
    %27 = vector.broadcast %26 : vector<1x1x32xf32> to vector<8x16x32xf32>
    %28 = arith.addf %25, %27 : vector<8x16x32xf32>
    %cst = arith.constant 0.000000e+00 : f32
    %29 = vector.broadcast %cst : f32 to vector<8x16x32xf32>
    %30 = arith.maximumf %28, %29 : vector<8x16x32xf32>
    %cst_6 = arith.constant 0.000000e+00 : f32
    %31 = vector.broadcast %cst_6 : f32 to vector<8x1x32xf32>
    %32 = tpu.concatenate %31, %30, %31 in 1 : vector<8x1x32xf32>, vector<8x16x32xf32>, vector<8x1x32xf32> -> vector<8x18x32xf32>
    %c0_7 = arith.constant 0 : index
    %c0_8 = arith.constant 0 : index
    %c0_9 = arith.constant 0 : index
    %33 = vector.load %arg7[%c0_7, %c0_8, %c0_9] : memref<8x18x32xf32, #tpu.memory_space<vmem>>, vector<8x18x32xf32>
    tpu.vector_store %arg7[%c0_7, %c0_8, %c0_9], %32 {strides = array<i32>} : memref<8x18x32xf32, #tpu.memory_space<vmem>>, vector<8x18x32xf32>,
    %c0_10 = arith.constant 0 : index
    %c0_11 = arith.constant 0 : index
    %c0_12 = arith.constant 0 : index
    %34 = vector.load %arg4[%c0_10, %c0_11, %c0_12] : memref<3x32x32xf32, #tpu.memory_space<vmem>>, vector<3x32x32xf32>
    %c0_13 = arith.constant 0 : index
    %c0_14 = arith.constant 0 : index
    %35 = vector.load %arg5[%c0_13, %c0_14] : memref<1x32xf32, #tpu.memory_space<vmem>>, vector<1x32xf32>
    %c0_15 = arith.constant 0 : index
    %c0_16 = arith.constant 0 : index
    %c0_17 = arith.constant 0 : index
    %36 = vector.load %arg7[%c0_15, %c0_16, %c0_17] : memref<8x18x32xf32, #tpu.memory_space<vmem>>, vector<8x16x32xf32>
    %37 = vector.shape_cast %36 : vector<8x16x32xf32> to vector<128x32xf32>
    %38 = vector.extract_strided_slice %34 {offsets = [0, 0, 0], sizes = [1, 32, 32], strides = [1, 1, 1]} : vector<3x32x32xf32> to vector<1x32x32xf32>
    %39 = vector.shape_cast %38 : vector<1x32x32xf32> to vector<32x32xf32>
    %cst_18 = arith.constant dense<0.000000e+00> : vector<128x32xf32>
    %40 = tpu.matmul %37, %39, %cst_18 {dimension_numbers = #tpu.dot_dimension_numbers<[1], [0], [0], [1], [0, 0, 1, 1], [], []>} : vector<128x32xf32>, vector<32x32xf32>, vector<128x32xf32> -> vector<128x32xf32>
    %c0_19 = arith.constant 0 : index
    %c1 = arith.constant 1 : index
    %c0_20 = arith.constant 0 : index
    %41 = vector.load %arg7[%c0_19, %c1, %c0_20] : memref<8x18x32xf32, #tpu.memory_space<vmem>>, vector<8x16x32xf32>
    %42 = vector.shape_cast %41 : vector<8x16x32xf32> to vector<128x32xf32>
    %43 = vector.extract_strided_slice %34 {offsets = [1, 0, 0], sizes = [1, 32, 32], strides = [1, 1, 1]} : vector<3x32x32xf32> to vector<1x32x32xf32>
    %44 = vector.shape_cast %43 : vector<1x32x32xf32> to vector<32x32xf32>
    %cst_21 = arith.constant dense<0.000000e+00> : vector<128x32xf32>
    %45 = tpu.matmul %42, %44, %cst_21 {dimension_numbers = #tpu.dot_dimension_numbers<[1], [0], [0], [1], [0, 0, 1, 1], [], []>} : vector<128x32xf32>, vector<32x32xf32>, vector<128x32xf32> -> vector<128x32xf32>
    %46 = arith.addf %40, %45 : vector<128x32xf32>
    %c0_22 = arith.constant 0 : index
    %c2 = arith.constant 2 : index
    %c0_23 = arith.constant 0 : index
    %47 = vector.load %arg7[%c0_22, %c2, %c0_23] : memref<8x18x32xf32, #tpu.memory_space<vmem>>, vector<8x16x32xf32>
    %48 = vector.shape_cast %47 : vector<8x16x32xf32> to vector<128x32xf32>
    %49 = vector.extract_strided_slice %34 {offsets = [2, 0, 0], sizes = [1, 32, 32], strides = [1, 1, 1]} : vector<3x32x32xf32> to vector<1x32x32xf32>
    %50 = vector.shape_cast %49 : vector<1x32x32xf32> to vector<32x32xf32>
    %cst_24 = arith.constant dense<0.000000e+00> : vector<128x32xf32>
    %51 = tpu.matmul %48, %50, %cst_24 {dimension_numbers = #tpu.dot_dimension_numbers<[1], [0], [0], [1], [0, 0, 1, 1], [], []>} : vector<128x32xf32>, vector<32x32xf32>, vector<128x32xf32> -> vector<128x32xf32>
    %52 = arith.addf %46, %51 : vector<128x32xf32>
    %53 = vector.broadcast %35 : vector<1x32xf32> to vector<128x32xf32>
    %54 = arith.addf %52, %53 : vector<128x32xf32>
    %cst_25 = arith.constant 0.000000e+00 : f32
    %55 = vector.broadcast %cst_25 : f32 to vector<128x32xf32>
    %56 = arith.maximumf %54, %55 : vector<128x32xf32>
    %57 = vector.shape_cast %56 : vector<128x32xf32> to vector<8x16x32xf32>
    %cst_26 = arith.constant dense<0.000000e+00> : vector<8x32xf32>
    %58 = vector.multi_reduction <add>, %57, %cst_26 [1] : vector<8x16x32xf32> to vector<8x32xf32>
    %cst_27 = arith.constant 6.250000e-02 : f32
    %59 = vector.broadcast %cst_27 : f32 to vector<8x32xf32>
    %60 = arith.mulf %58, %59 : vector<8x32xf32>
    %c0_28 = arith.constant 0 : index
    %c0_29 = arith.constant 0 : index
    %61 = vector.load %arg6[%c0_28, %c0_29] : memref<8x32xf32, #tpu.memory_space<vmem>>, vector<8x32xf32>
    tpu.vector_store %arg6[%c0_28, %c0_29], %60 {strides = array<i32>} : memref<8x32xf32, #tpu.memory_space<vmem>>, vector<8x32xf32>,
    return
  }
  func.func @transform_0(%arg0: i32) -> (i32, i32, i32) {
    %c0_i32 = arith.constant 0 : i32
    %c0_i32_0 = arith.constant 0 : i32
    %c0_i32_1 = arith.constant 0 : i32
    return %arg0, %c0_i32, %c0_i32_0 : i32, i32, i32
  }
  func.func @transform_1(%arg0: i32) -> (i32, i32) {
    %c0_i32 = arith.constant 0 : i32
    %c0_i32_0 = arith.constant 0 : i32
    %c0_i32_1 = arith.constant 0 : i32
    return %c0_i32, %c0_i32_0 : i32, i32
  }
  func.func @transform_2(%arg0: i32) -> (i32, i32) {
    %c0_i32 = arith.constant 0 : i32
    %c0_i32_0 = arith.constant 0 : i32
    %c0_i32_1 = arith.constant 0 : i32
    return %c0_i32, %c0_i32_0 : i32, i32
  }
  func.func @transform_3(%arg0: i32) -> (i32, i32, i32) {
    %c0_i32 = arith.constant 0 : i32
    %c0_i32_0 = arith.constant 0 : i32
    %c0_i32_1 = arith.constant 0 : i32
    %c0_i32_2 = arith.constant 0 : i32
    return %c0_i32, %c0_i32_0, %c0_i32_1 : i32, i32, i32
  }
  func.func @transform_4(%arg0: i32) -> (i32, i32) {
    %c0_i32 = arith.constant 0 : i32
    %c0_i32_0 = arith.constant 0 : i32
    %c0_i32_1 = arith.constant 0 : i32
    return %c0_i32, %c0_i32_0 : i32, i32
  }
  func.func @transform_5(%arg0: i32) -> (i32, i32) {
    %c0_i32 = arith.constant 0 : i32
    %c0_i32_0 = arith.constant 0 : i32
    return %arg0, %c0_i32 : i32, i32
  }
}

</mosaic_0001>

<llo_original>
// kernel: tpu_custom_call.1
$region0: #{tpu_custom_call.1}
  #allocation0 [shape = 'u32[]', space=smem, size = 0x4, offset = 0x4, fixed_abs, tag = 'smem constant byte address 0x4 - core index']
  #allocation1 [shape = 'u32[144,128]{1,0:T(1,128)}', space=vmem, size = 0x12000, scoped, tag = 'internal scratch']
  #allocation2 [shape = 'f32[8,18,32]{2,1,0:T(8,128)}', space=vmem, size = 0x18000, scoped, tag = 'scratch operand']
  %s0 = inlined_call_operand.vmem [shape: f32[8,18,1], index: 0, kind: input, shape index: {}]
  %s1 = inlined_call_operand.vmem [shape: f32[3,32], index: 1, kind: input, shape index: {}]
  %s2 = inlined_call_operand.vmem [shape: f32[1,32], index: 2, kind: input, shape index: {}]
  %s3 = inlined_call_operand.vmem [shape: f32[3,32,32], index: 3, kind: input, shape index: {}]
  %s4 = inlined_call_operand.vmem [shape: f32[1,32], index: 4, kind: input, shape index: {}]
  %s5 = inlined_call_operand.hbm [shape: f32[8,32], index: 5, kind: output, shape index: {}]
  %s6 = sld [smem:[#allocation0]]
  $region30: #{tpu_custom_call.1} parent=0
    _
  %s8 = ssub.s32 1, %s6
  %s9 = scalar_select 0, %s8, %s6
  $region1: #{tpu_custom_call.1} parent=0
    #allocation3 [shape = 'u8[4096]{0}', space=vmem, size = 0x1000, scoped, tag = 'output window, operand 0, single buffered']
    #allocation4 [shape = 's32[1]{0}', space=sflag, size = 0x4, scoped, tag = 'scoped memory for tpu_custom_call.1']
    %10 = vsyncpa [#allocation4], 0
    // Predicated region
    $region2: #{tpu_custom_call.1} parent=1 // pred_check
      _
    $region3: #{tpu_custom_call.1} parent=1 // pred_check_branch
      %12 = sbr.rel (0) target = $region5
    $region4: #{tpu_custom_call.1} parent=1 // pred_region
      _
    $region5: #{tpu_custom_call.1} parent=1 // pred_fallthru
      _
    // Predicated region
    $region6: #{tpu_custom_call.1} parent=1 // pred_check
      _
    $region7: #{tpu_custom_call.1} parent=1 // pred_check_branch
      %14 = sbr.rel (0) target = $region9
    $region8: #{tpu_custom_call.1} parent=1 // pred_region
      _
    $region9: #{tpu_custom_call.1} parent=1 // pred_fallthru
      _
    // Predicated region
    $region10: #{tpu_custom_call.1} parent=1 // pred_check
      _
    $region11: #{tpu_custom_call.1} parent=1 // pred_check_branch
      %16 = sbr.rel (0) target = $region13
    $region12: #{tpu_custom_call.1} parent=1 // pred_region
      _
    $region13: #{tpu_custom_call.1} parent=1 // pred_fallthru
      _
    // Predicated region
    $region14: #{tpu_custom_call.1} parent=1 // pred_check
      _
    $region15: #{tpu_custom_call.1} parent=1 // pred_check_branch
      %18 = sbr.rel (0) target = $region17
    $region16: #{tpu_custom_call.1} parent=1 // pred_region
      _
    $region17: #{tpu_custom_call.1} parent=1 // pred_fallthru
      _
    // Predicated region
    $region18: #{tpu_custom_call.1} parent=1 // pred_check
      _
    $region19: #{tpu_custom_call.1} parent=1 // pred_check_branch
      %20 = sbr.rel (0) target = $region21
    $region20: #{tpu_custom_call.1} parent=1 // pred_region
      _
    $region21: #{tpu_custom_call.1} parent=1 // pred_fallthru
      _
    %v21 = vld [vmem:[%s0] sm:$0xff]
    %v22 = vld [vmem:[%s0 + $0x8] sm:$0xff]
    %v23 = vld [vmem:[%s0 + $0x10] sm:$0x3]
    %v24 = vld [vmem:[%s0 + $0x18] sm:$0xff]
    %v25 = vld [vmem:[%s0 + $0x20] sm:$0xff]
    %v26 = vld [vmem:[%s0 + $0x28] sm:$0x3]
    %v27 = vld [vmem:[%s0 + $0x30] sm:$0xff]
    %v28 = vld [vmem:[%s0 + $0x38] sm:$0xff]
    %v29 = vld [vmem:[%s0 + $0x40] sm:$0x3]
    %v30 = vld [vmem:[%s0 + $0x48] sm:$0xff]
    %v31 = vld [vmem:[%s0 + $0x50] sm:$0xff]
    %v32 = vld [vmem:[%s0 + $0x58] sm:$0x3]
    %v33 = vld [vmem:[%s0 + $0x60] sm:$0xff]
    %v34 = vld [vmem:[%s0 + $0x68] sm:$0xff]
    %v35 = vld [vmem:[%s0 + $0x70] sm:$0x3]
    %v36 = vld [vmem:[%s0 + $0x78] sm:$0xff]
    %v37 = vld [vmem:[%s0 + $0x80] sm:$0xff]
    %v38 = vld [vmem:[%s0 + $0x88] sm:$0x3]
    %v39 = vld [vmem:[%s0 + $0x90] sm:$0xff]
    %v40 = vld [vmem:[%s0 + $0x98] sm:$0xff]
    %v41 = vld [vmem:[%s0 + $0xa0] sm:$0x3]
    %v42 = vld [vmem:[%s0 + $0xa8] sm:$0xff]
    %v43 = vld [vmem:[%s0 + $0xb0] sm:$0xff]
    %v44 = vld [vmem:[%s0 + $0xb8] sm:$0x3]
    %v45 = vld [vmem:[%s1] sm:$0x7]
    %v46 = vld [vmem:[%s2] sm:$0x1]
    %48 = vset.pattern.permute.xlu0 0
    %49 = vperm.xlu0 %48, %v21
    %v50 = vpop.permute.xlu0 %49
    %53 = vset.pattern.permute.xlu0 0
    %54 = vperm.xlu0 %53, %v22
    %v55 = vpop.permute.xlu0 %54
    %58 = vset.pattern.permute.xlu0 0
    %59 = vperm.xlu0 %58, %v24
    %v60 = vpop.permute.xlu0 %59
    %63 = vset.pattern.permute.xlu0 0
    %64 = vperm.xlu0 %63, %v25
    %v65 = vpop.permute.xlu0 %64
    %68 = vset.pattern.permute.xlu0 0
    %69 = vperm.xlu0 %68, %v27
    %v70 = vpop.permute.xlu0 %69
    %73 = vset.pattern.permute.xlu0 0
    %74 = vperm.xlu0 %73, %v28
    %v75 = vpop.permute.xlu0 %74
    %78 = vset.pattern.permute.xlu0 0
    %79 = vperm.xlu0 %78, %v30
    %v80 = vpop.permute.xlu0 %79
    %83 = vset.pattern.permute.xlu0 0
    %84 = vperm.xlu0 %83, %v31
    %v85 = vpop.permute.xlu0 %84
    %88 = vset.pattern.permute.xlu0 0
    %89 = vperm.xlu0 %88, %v33
    %v90 = vpop.permute.xlu0 %89
    %93 = vset.pattern.permute.xlu0 0
    %94 = vperm.xlu0 %93, %v34
    %v95 = vpop.permute.xlu0 %94
    %98 = vset.pattern.permute.xlu0 0
    %99 = vperm.xlu0 %98, %v36
    %v100 = vpop.permute.xlu0 %99
    %103 = vset.pattern.permute.xlu0 0
    %104 = vperm.xlu0 %103, %v37
    %v105 = vpop.permute.xlu0 %104
    %108 = vset.pattern.permute.xlu0 0
    %109 = vperm.xlu0 %108, %v39
    %v110 = vpop.permute.xlu0 %109
    %113 = vset.pattern.permute.xlu0 0
    %114 = vperm.xlu0 %113, %v40
    %v115 = vpop.permute.xlu0 %114
    %118 = vset.pattern.permute.xlu0 0
    %119 = vperm.xlu0 %118, %v42
    %v120 = vpop.permute.xlu0 %119
    %123 = vset.pattern.permute.xlu0 0
    %124 = vperm.xlu0 %123, %v43
    %v125 = vpop.permute.xlu0 %124
    %v127 = vlaneseq
    %v128 = vshrl.u32 %v127, 7
    %v129 = vsub.s32 0, %v128
    %v130 = vrot.slane %v45, %v129
    %v131 = vmul.f32 %v50, %v130
    %v132 = vmul.f32 %v55, %v130
    %v133 = vmul.f32 %v60, %v130
    %v134 = vmul.f32 %v65, %v130
    %v135 = vmul.f32 %v70, %v130
    %v136 = vmul.f32 %v75, %v130
    %v137 = vmul.f32 %v80, %v130
    %v138 = vmul.f32 %v85, %v130
    %v139 = vmul.f32 %v90, %v130
    %v140 = vmul.f32 %v95, %v130
    %v141 = vmul.f32 %v100, %v130
    %v142 = vmul.f32 %v105, %v130
    %v143 = vmul.f32 %v110, %v130
    %v144 = vmul.f32 %v115, %v130
    %v145 = vmul.f32 %v120, %v130
    %v146 = vmul.f32 %v125, %v130
    %148 = vset.pattern.permute.xlu0 0
    %149 = vperm.xlu0 %148, %v23
    %v150 = vpop.permute.xlu0 %149
    %153 = vset.pattern.permute.xlu0 0
    %154 = vperm.xlu0 %153, %v26
    %v155 = vpop.permute.xlu0 %154
    %158 = vset.pattern.permute.xlu0 0
    %159 = vperm.xlu0 %158, %v29
    %v160 = vpop.permute.xlu0 %159
    %163 = vset.pattern.permute.xlu0 0
    %164 = vperm.xlu0 %163, %v32
    %v165 = vpop.permute.xlu0 %164
    %168 = vset.pattern.permute.xlu0 0
    %169 = vperm.xlu0 %168, %v35
    %v170 = vpop.permute.xlu0 %169
    %173 = vset.pattern.permute.xlu0 0
    %174 = vperm.xlu0 %173, %v38
    %v175 = vpop.permute.xlu0 %174
    %178 = vset.pattern.permute.xlu0 0
    %179 = vperm.xlu0 %178, %v41
    %v180 = vpop.permute.xlu0 %179
    %183 = vset.pattern.permute.xlu0 0
    %184 = vperm.xlu0 %183, %v44
    %v185 = vpop.permute.xlu0 %184
    %v187 = vlaneseq
    %v188 = vshrl.u32 %v187, 7
    %v189 = vsub.s32 1, %v188
    %v190 = vrot.slane %v45, %v189
    %v191 = vmul.f32 %v50, %v190
    %v192 = vmul.f32 %v55, %v190
    %v193 = vmul.f32 %v150, %v190
    %v194 = vmul.f32 %v60, %v190
    %v195 = vmul.f32 %v65, %v190
    %v196 = vmul.f32 %v155, %v190
    %v197 = vmul.f32 %v70, %v190
    %v198 = vmul.f32 %v75, %v190
    %v199 = vmul.f32 %v160, %v190
    %v200 = vmul.f32 %v80, %v190
    %v201 = vmul.f32 %v85, %v190
    %v202 = vmul.f32 %v165, %v190
    %v203 = vmul.f32 %v90, %v190
    %v204 = vmul.f32 %v95, %v190
    %v205 = vmul.f32 %v170, %v190
    %v206 = vmul.f32 %v100, %v190
    %v207 = vmul.f32 %v105, %v190
    %v208 = vmul.f32 %v175, %v190
    %v209 = vmul.f32 %v110, %v190
    %v210 = vmul.f32 %v115, %v190
    %v211 = vmul.f32 %v180, %v190
    %v212 = vmul.f32 %v120, %v190
    %v213 = vmul.f32 %v125, %v190
    %v214 = vmul.f32 %v185, %v190
    %vm239 = vcmask 1046528
    %v240 = vrot.slane %v191, 1
    %v241 = vrot.slane %v192, 1
    %v242 = vsel %vm239, %v240, %v241
    %v243 = vrot.slane %v193, 1
    %v244 = vsel %vm239, %v241, %v243
    %v245 = vrot.slane %v194, 1
    %v246 = vrot.slane %v195, 1
    %v247 = vsel %vm239, %v245, %v246
    %v248 = vrot.slane %v196, 1
    %v249 = vsel %vm239, %v246, %v248
    %v250 = vrot.slane %v197, 1
    %v251 = vrot.slane %v198, 1
    %v252 = vsel %vm239, %v250, %v251
    %v253 = vrot.slane %v199, 1
    %v254 = vsel %vm239, %v251, %v253
    %v255 = vrot.slane %v200, 1
    %v256 = vrot.slane %v201, 1
    %v257 = vsel %vm239, %v255, %v256
    %v258 = vrot.slane %v202, 1
    %v259 = vsel %vm239, %v256, %v258
    %v260 = vrot.slane %v203, 1
    %v261 = vrot.slane %v204, 1
    %v262 = vsel %vm239, %v260, %v261
    %v263 = vrot.slane %v205, 1
    %v264 = vsel %vm239, %v261, %v263
    %v265 = vrot.slane %v206, 1
    %v266 = vrot.slane %v207, 1
    %v267 = vsel %vm239, %v265, %v266
    %v268 = vrot.slane %v208, 1
    %v269 = vsel %vm239, %v266, %v268
    %v270 = vrot.slane %v209, 1
    %v271 = vrot.slane %v210, 1
    %v272 = vsel %vm239, %v270, %v271
    %v273 = vrot.slane %v211, 1
    %v274 = vsel %vm239, %v271, %v273
    %v275 = vrot.slane %v212, 1
    %v276 = vrot.slane %v213, 1
    %v277 = vsel %vm239, %v275, %v276
    %v278 = vrot.slane %v214, 1
    %v279 = vsel %vm239, %v276, %v278
    %v296 = vadd.f32 %v131, %v242
    %v297 = vadd.f32 %v132, %v244
    %v298 = vadd.f32 %v133, %v247
    %v299 = vadd.f32 %v134, %v249
    %v300 = vadd.f32 %v135, %v252
    %v301 = vadd.f32 %v136, %v254
    %v302 = vadd.f32 %v137, %v257
    %v303 = vadd.f32 %v138, %v259
    %v304 = vadd.f32 %v139, %v262
    %v305 = vadd.f32 %v140, %v264
    %v306 = vadd.f32 %v141, %v267
    %v307 = vadd.f32 %v142, %v269
    %v308 = vadd.f32 %v143, %v272
    %v309 = vadd.f32 %v144, %v274
    %v310 = vadd.f32 %v145, %v277
    %v311 = vadd.f32 %v146, %v279
    %v312 = vlaneseq
    %v313 = vshrl.u32 %v312, 7
    %v314 = vsub.s32 2, %v313
    %v315 = vrot.slane %v45, %v314
    %v316 = vmul.f32 %v50, %v315
    %v317 = vmul.f32 %v55, %v315
    %v318 = vmul.f32 %v150, %v315
    %v319 = vmul.f32 %v60, %v315
    %v320 = vmul.f32 %v65, %v315
    %v321 = vmul.f32 %v155, %v315
    %v322 = vmul.f32 %v70, %v315
    %v323 = vmul.f32 %v75, %v315
    %v324 = vmul.f32 %v160, %v315
    %v325 = vmul.f32 %v80, %v315
    %v326 = vmul.f32 %v85, %v315
    %v327 = vmul.f32 %v165, %v315
    %v328 = vmul.f32 %v90, %v315
    %v329 = vmul.f32 %v95, %v315
    %v330 = vmul.f32 %v170, %v315
    %v331 = vmul.f32 %v100, %v315
    %v332 = vmul.f32 %v105, %v315
    %v333 = vmul.f32 %v175, %v315
    %v334 = vmul.f32 %v110, %v315
    %v335 = vmul.f32 %v115, %v315
    %v336 = vmul.f32 %v180, %v315
    %v337 = vmul.f32 %v120, %v315
    %v338 = vmul.f32 %v125, %v315
    %v339 = vmul.f32 %v185, %v315
    %vm364 = vcmask 1045504
    %v365 = vrot.slane %v316, 2
    %v366 = vrot.slane %v317, 2
    %v367 = vsel %vm364, %v365, %v366
    %v368 = vrot.slane %v318, 2
    %v369 = vsel %vm364, %v366, %v368
    %v370 = vrot.slane %v319, 2
    %v371 = vrot.slane %v320, 2
    %v372 = vsel %vm364, %v370, %v371
    %v373 = vrot.slane %v321, 2
    %v374 = vsel %vm364, %v371, %v373
    %v375 = vrot.slane %v322, 2
    %v376 = vrot.slane %v323, 2
    %v377 = vsel %vm364, %v375, %v376
    %v378 = vrot.slane %v324, 2
    %v379 = vsel %vm364, %v376, %v378
    %v380 = vrot.slane %v325, 2
    %v381 = vrot.slane %v326, 2
    %v382 = vsel %vm364, %v380, %v381
    %v383 = vrot.slane %v327, 2
    %v384 = vsel %vm364, %v381, %v383
    %v385 = vrot.slane %v328, 2
    %v386 = vrot.slane %v329, 2
    %v387 = vsel %vm364, %v385, %v386
    %v388 = vrot.slane %v330, 2
    %v389 = vsel %vm364, %v386, %v388
    %v390 = vrot.slane %v331, 2
    %v391 = vrot.slane %v332, 2
    %v392 = vsel %vm364, %v390, %v391
    %v393 = vrot.slane %v333, 2
    %v394 = vsel %vm364, %v391, %v393
    %v395 = vrot.slane %v334, 2
    %v396 = vrot.slane %v335, 2
    %v397 = vsel %vm364, %v395, %v396
    %v398 = vrot.slane %v336, 2
    %v399 = vsel %vm364, %v396, %v398
    %v400 = vrot.slane %v337, 2
    %v401 = vrot.slane %v338, 2
    %v402 = vsel %vm364, %v400, %v401
    %v403 = vrot.slane %v339, 2
    %v404 = vsel %vm364, %v401, %v403
    %v421 = vadd.f32 %v296, %v367
    %v422 = vadd.f32 %v297, %v369
    %v423 = vadd.f32 %v298, %v372
    %v424 = vadd.f32 %v299, %v374
    %v425 = vadd.f32 %v300, %v377
    %v426 = vadd.f32 %v301, %v379
    %v427 = vadd.f32 %v302, %v382
    %v428 = vadd.f32 %v303, %v384
    %v429 = vadd.f32 %v304, %v387
    %v430 = vadd.f32 %v305, %v389
    %v431 = vadd.f32 %v306, %v392
    %v432 = vadd.f32 %v307, %v394
    %v433 = vadd.f32 %v308, %v397
    %v434 = vadd.f32 %v309, %v399
    %v435 = vadd.f32 %v310, %v402
    %v436 = vadd.f32 %v311, %v404
    %v438 = vlaneseq
    %v439 = vshrl.u32 %v438, 7
    %v440 = vsub.s32 0, %v439
    %v441 = vrot.slane %v46, %v440
    %v443 = vadd.f32 %v421, %v441
    %v444 = vadd.f32 %v422, %v441
    %v445 = vadd.f32 %v423, %v441
    %v446 = vadd.f32 %v424, %v441
    %v447 = vadd.f32 %v425, %v441
    %v448 = vadd.f32 %v426, %v441
    %v449 = vadd.f32 %v427, %v441
    %v450 = vadd.f32 %v428, %v441
    %v451 = vadd.f32 %v429, %v441
    %v452 = vadd.f32 %v430, %v441
    %v453 = vadd.f32 %v431, %v441
    %v454 = vadd.f32 %v432, %v441
    %v455 = vadd.f32 %v433, %v441
    %v456 = vadd.f32 %v434, %v441
    %v457 = vadd.f32 %v435, %v441
    %v458 = vadd.f32 %v436, %v441
    %v459 = vmax.f32 %v443, 0.0
    %v460 = vmax.f32 %v444, 0.0
    %v461 = vmax.f32 %v445, 0.0
    %v462 = vmax.f32 %v446, 0.0
    %v463 = vmax.f32 %v447, 0.0
    %v464 = vmax.f32 %v448, 0.0
    %v465 = vmax.f32 %v449, 0.0
    %v466 = vmax.f32 %v450, 0.0
    %v467 = vmax.f32 %v451, 0.0
    %v468 = vmax.f32 %v452, 0.0
    %v469 = vmax.f32 %v453, 0.0
    %v470 = vmax.f32 %v454, 0.0
    %v471 = vmax.f32 %v455, 0.0
    %v472 = vmax.f32 %v456, 0.0
    %v473 = vmax.f32 %v457, 0.0
    %v474 = vmax.f32 %v458, 0.0
    %vm491 = vcmask 1040384
    %v492 = vrot.slane %v459, 7
    %v493 = vrot.slane %v460, 7
    %v494 = vsel %vm491, %v492, %v493
    %v495 = vrot.slane %v461, 7
    %v496 = vrot.slane %v462, 7
    %v497 = vsel %vm491, %v495, %v496
    %v498 = vrot.slane %v463, 7
    %v499 = vrot.slane %v464, 7
    %v500 = vsel %vm491, %v498, %v499
    %v501 = vrot.slane %v465, 7
    %v502 = vrot.slane %v466, 7
    %v503 = vsel %vm491, %v501, %v502
    %v504 = vrot.slane %v467, 7
    %v505 = vrot.slane %v468, 7
    %v506 = vsel %vm491, %v504, %v505
    %v507 = vrot.slane %v469, 7
    %v508 = vrot.slane %v470, 7
    %v509 = vsel %vm491, %v507, %v508
    %v510 = vrot.slane %v471, 7
    %v511 = vrot.slane %v472, 7
    %v512 = vsel %vm491, %v510, %v511
    %v513 = vrot.slane %v473, 7
    %v514 = vrot.slane %v474, 7
    %v515 = vsel %vm491, %v513, %v514
    %v540 = vsel %vm491, 0.0, %v492
    %v541 = vsel %vm491, 0.0, %v495
    %v542 = vsel %vm491, 0.0, %v498
    %v543 = vsel %vm491, 0.0, %v501
    %v544 = vsel %vm491, 0.0, %v504
    %v545 = vsel %vm491, 0.0, %v507
    %v546 = vsel %vm491, 0.0, %v510
    %v547 = vsel %vm491, 0.0, %v513
    %v548 = vsel %vm491, %v493, 0.0
    %v549 = vsel %vm491, %v496, 0.0
    %v550 = vsel %vm491, %v499, 0.0
    %v551 = vsel %vm491, %v502, 0.0
    %v552 = vsel %vm491, %v505, 0.0
    %v553 = vsel %vm491, %v508, 0.0
    %v554 = vsel %vm491, %v511, 0.0
    %v555 = vsel %vm491, %v514, 0.0
    %vm556 = vcmask 261120
    %557 = vst.msk [vmem:[#allocation2] sm:$0xff] %vm556, %v540
    %558 = vst.msk [vmem:[#allocation2 + $0x8] sm:$0xff] %vm556, %v494
    %vm559 = vcmask 254976
    %560 = vst.msk [vmem:[#allocation2 + $0x10] sm:$0x3] %vm559, %v548
    %561 = vst.msk [vmem:[#allocation2 + $0x18] sm:$0xff] %vm556, %v541
    %562 = vst.msk [vmem:[#allocation2 + $0x20] sm:$0xff] %vm556, %v497
    %563 = vst.msk [vmem:[#allocation2 + $0x28] sm:$0x3] %vm559, %v549
    %564 = vst.msk [vmem:[#allocation2 + $0x30] sm:$0xff] %vm556, %v542
    %565 = vst.msk [vmem:[#allocation2 + $0x38] sm:$0xff] %vm556, %v500
    %566 = vst.msk [vmem:[#allocation2 + $0x40] sm:$0x3] %vm559, %v550
    %567 = vst.msk [vmem:[#allocation2 + $0x48] sm:$0xff] %vm556, %v543
    %568 = vst.msk [vmem:[#allocation2 + $0x50] sm:$0xff] %vm556, %v503
    %569 = vst.msk [vmem:[#allocation2 + $0x58] sm:$0x3] %vm559, %v551
    %570 = vst.msk [vmem:[#allocation2 + $0x60] sm:$0xff] %vm556, %v544
    %571 = vst.msk [vmem:[#allocation2 + $0x68] sm:$0xff] %vm556, %v506
    %572 = vst.msk [vmem:[#allocation2 + $0x70] sm:$0x3] %vm559, %v552
    %573 = vst.msk [vmem:[#allocation2 + $0x78] sm:$0xff] %vm556, %v545
    %574 = vst.msk [vmem:[#allocation2 + $0x80] sm:$0xff] %vm556, %v509
    %575 = vst.msk [vmem:[#allocation2 + $0x88] sm:$0x3] %vm559, %v553
    %576 = vst.msk [vmem:[#allocation2 + $0x90] sm:$0xff] %vm556, %v546
    %577 = vst.msk [vmem:[#allocation2 + $0x98] sm:$0xff] %vm556, %v512
    %578 = vst.msk [vmem:[#allocation2 + $0xa0] sm:$0x3] %vm559, %v554
    %579 = vst.msk [vmem:[#allocation2 + $0xa8] sm:$0xff] %vm556, %v547
    %580 = vst.msk [vmem:[#allocation2 + $0xb0] sm:$0xff] %vm556, %v515
    %581 = vst.msk [vmem:[#allocation2 + $0xb8] sm:$0x3] %vm559, %v555
    %v582 = vld [vmem:[%s3] sm:$0xff]
    %v583 = vld [vmem:[%s3 + $0x8] sm:$0xff]
    %v584 = vld [vmem:[%s3 + $0x10] sm:$0xff]
    %v585 = vld [vmem:[%s3 + $0x18] sm:$0xff]
    %v586 = vld [vmem:[%s3 + $0x20] sm:$0xff]
    %v587 = vld [vmem:[%s3 + $0x28] sm:$0xff]
    %v588 = vld [vmem:[%s3 + $0x30] sm:$0xff]
    %v589 = vld [vmem:[%s3 + $0x38] sm:$0xff]
    %v590 = vld [vmem:[%s3 + $0x40] sm:$0xff]
    %v591 = vld [vmem:[%s3 + $0x48] sm:$0xff]
    %v592 = vld [vmem:[%s3 + $0x50] sm:$0xff]
    %v593 = vld [vmem:[%s3 + $0x58] sm:$0xff]
    %v594 = vld [vmem:[%s4] sm:$0x1]
    %v595 = vld [vmem:[#allocation2] sm:$0xff]
    %v596 = vld [vmem:[#allocation2 + $0x8] sm:$0xff]
    %v597 = vld [vmem:[#allocation2 + $0x18] sm:$0xff]
    %v598 = vld [vmem:[#allocation2 + $0x20] sm:$0xff]
    %v599 = vld [vmem:[#allocation2 + $0x30] sm:$0xff]
    %v600 = vld [vmem:[#allocation2 + $0x38] sm:$0xff]
    %v601 = vld [vmem:[#allocation2 + $0x48] sm:$0xff]
    %v602 = vld [vmem:[#allocation2 + $0x50] sm:$0xff]
    %v603 = vld [vmem:[#allocation2 + $0x60] sm:$0xff]
    %v604 = vld [vmem:[#allocation2 + $0x68] sm:$0xff]
    %v605 = vld [vmem:[#allocation2 + $0x78] sm:$0xff]
    %v606 = vld [vmem:[#allocation2 + $0x80] sm:$0xff]
    %v607 = vld [vmem:[#allocation2 + $0x90] sm:$0xff]
    %v608 = vld [vmem:[#allocation2 + $0x98] sm:$0xff]
    %v609 = vld [vmem:[#allocation2 + $0xa8] sm:$0xff]
    %v610 = vld [vmem:[#allocation2 + $0xb0] sm:$0xff]
    %v611 = vld [vmem:[#allocation2 + $0x1] sm:$0xff]
    %v612 = vld [vmem:[#allocation2 + $0x9] sm:$0xff]
    %v613 = vld [vmem:[#allocation2 + $0x19] sm:$0xff]
    %v614 = vld [vmem:[#allocation2 + $0x21] sm:$0xff]
    %v615 = vld [vmem:[#allocation2 + $0x31] sm:$0xff]
    %v616 = vld [vmem:[#allocation2 + $0x39] sm:$0xff]
    %v617 = vld [vmem:[#allocation2 + $0x49] sm:$0xff]
    %v618 = vld [vmem:[#allocation2 + $0x51] sm:$0xff]
    %v619 = vld [vmem:[#allocation2 + $0x61] sm:$0xff]
    %v620 = vld [vmem:[#allocation2 + $0x69] sm:$0xff]
    %v621 = vld [vmem:[#allocation2 + $0x79] sm:$0xff]
    %v622 = vld [vmem:[#allocation2 + $0x81] sm:$0xff]
    %v623 = vld [vmem:[#allocation2 + $0x91] sm:$0xff]
    %v624 = vld [vmem:[#allocation2 + $0x99] sm:$0xff]
    %v625 = vld [vmem:[#allocation2 + $0xa9] sm:$0xff]
    %v626 = vld [vmem:[#allocation2 + $0xb1] sm:$0xff]
    %v628 = vsel %vm556, %v611, 0
    %v631 = vsel %vm556, %v612, 0
    %v634 = vsel %vm556, %v613, 0
    %v637 = vsel %vm556, %v614, 0
    %v640 = vsel %vm556, %v615, 0
    %v643 = vsel %vm556, %v616, 0
    %v646 = vsel %vm556, %v617, 0
    %v649 = vsel %vm556, %v618, 0
    %v652 = vsel %vm556, %v619, 0
    %v655 = vsel %vm556, %v620, 0
    %v658 = vsel %vm556, %v621, 0
    %v661 = vsel %vm556, %v622, 0
    %v664 = vsel %vm556, %v623, 0
    %v667 = vsel %vm556, %v624, 0
    %v670 = vsel %vm556, %v625, 0
    %v673 = vsel %vm556, %v626, 0
    %675 = vmatprep.subr.mxu0 0.0
    %676 = vmatpush1.msra.mxu0 0.0
    %677 = vmatprep.subr.mxu0 0.0
    %678 = vmatpush1.msra.mxu0 0.0
    %679 = vmatprep.subr.mxu0 0.0
    %680 = vmatpush1.msra.mxu0 0.0
    %681 = vmatprep.subr.mxu0 0.0
    %682 = vmatpush1.msra.mxu0 0.0
    %683 = vmatprep.subr.mxu0 0.0
    %684 = vmatpush1.msra.mxu0 0.0
    %685 = vmatprep.subr.mxu0 0.0
    %686 = vmatpush1.msra.mxu0 0.0
    %687 = vmatprep.subr.mxu0 0.0
    %688 = vmatpush1.msra.mxu0 0.0
    %689 = vmatprep.subr.mxu0 0.0
    %690 = vmatpush1.msra.mxu0 0.0
    %691 = vmatprep.subr.mxu0 0.0
    %692 = vmatpush1.msra.mxu0 0.0
    %693 = vmatprep.subr.mxu0 0.0
    %694 = vmatpush1.msra.mxu0 0.0
    %695 = vmatprep.subr.mxu0 0.0
    %696 = vmatpush1.msra.mxu0 0.0
    %697 = vmatprep.subr.mxu0 0.0
    %698 = vmatpush1.msra.mxu0 0.0
    %699 = vmatprep.subr.mxu0 0.0
    %700 = vmatpush1.msra.mxu0 %v589
    %701 = vmatprep.subr.mxu0 0.0
    %702 = vmatpush1.msra.mxu0 %v588
    %703 = vmatprep.subr.mxu0 0.0
    %704 = vmatpush1.msra.mxu0 %v587
    %705 = vmatprep.subr.mxu0 0.0
    %706 = vmatpush1.msra.mxu0 %v586
    %707 = vmatprep.subr.mxu0 0.0
    %708 = vmatpush2.msra.mxu0 0.0
    %709 = vmatprep.subr.mxu0 0.0
    %710 = vmatpush2.msra.mxu0 0.0
    %711 = vmatprep.subr.mxu0 0.0
    %712 = vmatpush2.msra.mxu0 0.0
    %713 = vmatprep.subr.mxu0 0.0
    %714 = vmatpush2.msra.mxu0 0.0
    %715 = vmatprep.subr.mxu0 0.0
    %716 = vmatpush2.msra.mxu0 0.0
    %717 = vmatprep.subr.mxu0 0.0
    %718 = vmatpush2.msra.mxu0 0.0
    %719 = vmatprep.subr.mxu0 0.0
    %720 = vmatpush2.msra.mxu0 0.0
    %721 = vmatprep.subr.mxu0 0.0
    %722 = vmatpush2.msra.mxu0 0.0
    %723 = vmatprep.subr.mxu0 0.0
    %724 = vmatpush2.msra.mxu0 0.0
    %725 = vmatprep.subr.mxu0 0.0
    %726 = vmatpush2.msra.mxu0 0.0
    %727 = vmatprep.subr.mxu0 0.0
    %728 = vmatpush2.msra.mxu0 0.0
    %729 = vmatprep.subr.mxu0 0.0
    %730 = vmatpush2.msra.mxu0 0.0
    %731 = vmatprep.subr.mxu0 0.0
    %732 = vmatpush2.msra.mxu0 0.0
    %733 = vmatprep.subr.mxu0 0.0
    %734 = vmatpush2.msra.mxu0 0.0
    %735 = vmatprep.subr.mxu0 0.0
    %736 = vmatpush2.msra.mxu0 0.0
    %737 = vmatprep.subr.mxu0 0.0
    %738 = vmatpush2.msra.mxu0 0.0
    %739 = vmatprep.mubr.f32.mxu0 0.0
    %740 = vmatmul.mubr.f32.gmra.mxu0 %v628
    %v741 = vpop.f32.mrf.mxu0
    %v742 = vadd.f32 0.0, %v741
    %v743 = vpop.f32.mrf.mxu0
    %744 = vmatprep.mubr.f32.mxu0 0.0
    %745 = vmatmul.mubr.f32.gmra.mxu0 %v631
    %v746 = vpop.f32.mrf.mxu0
    %v747 = vadd.f32 0.0, %v746
    %v748 = vpop.f32.mrf.mxu0
    %749 = vmatprep.mubr.f32.mxu0 0.0
    %750 = vmatmul.mubr.f32.gmra.mxu0 %v634
    %v751 = vpop.f32.mrf.mxu0
    %v752 = vadd.f32 0.0, %v751
    %v753 = vpop.f32.mrf.mxu0
    %754 = vmatprep.mubr.f32.mxu0 0.0
    %755 = vmatmul.mubr.f32.gmra.mxu0 %v637
    %v756 = vpop.f32.mrf.mxu0
    %v757 = vadd.f32 0.0, %v756
    %v758 = vpop.f32.mrf.mxu0
    %759 = vmatprep.mubr.f32.mxu0 0.0
    %760 = vmatmul.mubr.f32.gmra.mxu0 %v640
    %v761 = vpop.f32.mrf.mxu0
    %v762 = vadd.f32 0.0, %v761
    %v763 = vpop.f32.mrf.mxu0
    %764 = vmatprep.mubr.f32.mxu0 0.0
    %765 = vmatmul.mubr.f32.gmra.mxu0 %v643
    %v766 = vpop.f32.mrf.mxu0
    %v767 = vadd.f32 0.0, %v766
    %v768 = vpop.f32.mrf.mxu0
    %769 = vmatprep.mubr.f32.mxu0 0.0
    %770 = vmatmul.mubr.f32.gmra.mxu0 %v646
    %v771 = vpop.f32.mrf.mxu0
    %v772 = vadd.f32 0.0, %v771
    %v773 = vpop.f32.mrf.mxu0
    %774 = vmatprep.mubr.f32.mxu0 0.0
    %775 = vmatmul.mubr.f32.gmra.mxu0 %v649
    %v776 = vpop.f32.mrf.mxu0
    %v777 = vadd.f32 0.0, %v776
    %v778 = vpop.f32.mrf.mxu0
    %779 = vmatprep.mubr.f32.mxu0 0.0
    %780 = vmatmul.mubr.f32.gmra.mxu0 %v652
    %v781 = vpop.f32.mrf.mxu0
    %v782 = vadd.f32 0.0, %v781
    %v783 = vpop.f32.mrf.mxu0
    %784 = vmatprep.mubr.f32.mxu0 0.0
    %785 = vmatmul.mubr.f32.gmra.mxu0 %v655
    %v786 = vpop.f32.mrf.mxu0
    %v787 = vadd.f32 0.0, %v786
    %v788 = vpop.f32.mrf.mxu0
    %789 = vmatprep.mubr.f32.mxu0 0.0
    %790 = vmatmul.mubr.f32.gmra.mxu0 %v658
    %v791 = vpop.f32.mrf.mxu0
    %v792 = vadd.f32 0.0, %v791
    %v793 = vpop.f32.mrf.mxu0
    %794 = vmatprep.mubr.f32.mxu0 0.0
    %795 = vmatmul.mubr.f32.gmra.mxu0 %v661
    %v796 = vpop.f32.mrf.mxu0
    %v797 = vadd.f32 0.0, %v796
    %v798 = vpop.f32.mrf.mxu0
    %799 = vmatprep.mubr.f32.mxu0 0.0
    %800 = vmatmul.mubr.f32.gmra.mxu0 %v664
    %v801 = vpop.f32.mrf.mxu0
    %v802 = vadd.f32 0.0, %v801
    %v803 = vpop.f32.mrf.mxu0
    %804 = vmatprep.mubr.f32.mxu0 0.0
    %805 = vmatmul.mubr.f32.gmra.mxu0 %v667
    %v806 = vpop.f32.mrf.mxu0
    %v807 = vadd.f32 0.0, %v806
    %v808 = vpop.f32.mrf.mxu0
    %809 = vmatprep.mubr.f32.mxu0 0.0
    %810 = vmatmul.mubr.f32.gmra.mxu0 %v670
    %v811 = vpop.f32.mrf.mxu0
    %v812 = vadd.f32 0.0, %v811
    %v813 = vpop.f32.mrf.mxu0
    %814 = vmatprep.mubr.f32.mxu0 0.0
    %815 = vmatmul.mubr.f32.gmra.mxu0 %v673
    %v816 = vpop.f32.mrf.mxu0
    %v817 = vadd.f32 0.0, %v816
    %v818 = vpop.f32.mrf.mxu0
    %819 = vdwg.mxu0
    %v821 = vsel %vm556, %v595, 0
    %v824 = vsel %vm556, %v596, 0
    %v827 = vsel %vm556, %v597, 0
    %v830 = vsel %vm556, %v598, 0
    %v833 = vsel %vm556, %v599, 0
    %v836 = vsel %vm556, %v600, 0
    %v839 = vsel %vm556, %v601, 0
    %v842 = vsel %vm556, %v602, 0
    %v845 = vsel %vm556, %v603, 0
    %v848 = vsel %vm556, %v604, 0
    %v851 = vsel %vm556, %v605, 0
    %v854 = vsel %vm556, %v606, 0
    %v857 = vsel %vm556, %v607, 0
    %v860 = vsel %vm556, %v608, 0
    %v863 = vsel %vm556, %v609, 0
    %v866 = vsel %vm556, %v610, 0
    %868 = vmatprep.subr.mxu0 0.0
    %869 = vmatpush1.msra.mxu0 0.0
    %870 = vmatprep.subr.mxu0 0.0
    %871 = vmatpush1.msra.mxu0 0.0
    %872 = vmatprep.subr.mxu0 0.0
    %873 = vmatpush1.msra.mxu0 0.0
    %874 = vmatprep.subr.mxu0 0.0
    %875 = vmatpush1.msra.mxu0 0.0
    %876 = vmatprep.subr.mxu0 0.0
    %877 = vmatpush1.msra.mxu0 0.0
    %878 = vmatprep.subr.mxu0 0.0
    %879 = vmatpush1.msra.mxu0 0.0
    %880 = vmatprep.subr.mxu0 0.0
    %881 = vmatpush1.msra.mxu0 0.0
    %882 = vmatprep.subr.mxu0 0.0
    %883 = vmatpush1.msra.mxu0 0.0
    %884 = vmatprep.subr.mxu0 0.0
    %885 = vmatpush1.msra.mxu0 0.0
    %886 = vmatprep.subr.mxu0 0.0
    %887 = vmatpush1.msra.mxu0 0.0
    %888 = vmatprep.subr.mxu0 0.0
    %889 = vmatpush1.msra.mxu0 0.0
    %890 = vmatprep.subr.mxu0 0.0
    %891 = vmatpush1.msra.mxu0 0.0
    %892 = vmatprep.subr.mxu0 0.0
    %893 = vmatpush1.msra.mxu0 %v585
    %894 = vmatprep.subr.mxu0 0.0
    %895 = vmatpush1.msra.mxu0 %v584
    %896 = vmatprep.subr.mxu0 0.0
    %897 = vmatpush1.msra.mxu0 %v583
    %898 = vmatprep.subr.mxu0 0.0
    %899 = vmatpush1.msra.mxu0 %v582
    %900 = vmatprep.subr.mxu0 0.0
    %901 = vmatpush2.msra.mxu0 0.0
    %902 = vmatprep.subr.mxu0 0.0
    %903 = vmatpush2.msra.mxu0 0.0
    %904 = vmatprep.subr.mxu0 0.0
    %905 = vmatpush2.msra.mxu0 0.0
    %906 = vmatprep.subr.mxu0 0.0
    %907 = vmatpush2.msra.mxu0 0.0
    %908 = vmatprep.subr.mxu0 0.0
    %909 = vmatpush2.msra.mxu0 0.0
    %910 = vmatprep.subr.mxu0 0.0
    %911 = vmatpush2.msra.mxu0 0.0
    %912 = vmatprep.subr.mxu0 0.0
    %913 = vmatpush2.msra.mxu0 0.0
    %914 = vmatprep.subr.mxu0 0.0
    %915 = vmatpush2.msra.mxu0 0.0
    %916 = vmatprep.subr.mxu0 0.0
    %917 = vmatpush2.msra.mxu0 0.0
    %918 = vmatprep.subr.mxu0 0.0
    %919 = vmatpush2.msra.mxu0 0.0
    %920 = vmatprep.subr.mxu0 0.0
    %921 = vmatpush2.msra.mxu0 0.0
    %922 = vmatprep.subr.mxu0 0.0
    %923 = vmatpush2.msra.mxu0 0.0
    %924 = vmatprep.subr.mxu0 0.0
    %925 = vmatpush2.msra.mxu0 0.0
    %926 = vmatprep.subr.mxu0 0.0
    %927 = vmatpush2.msra.mxu0 0.0
    %928 = vmatprep.subr.mxu0 0.0
    %929 = vmatpush2.msra.mxu0 0.0
    %930 = vmatprep.subr.mxu0 0.0
    %931 = vmatpush2.msra.mxu0 0.0
    %932 = vmatprep.mubr.f32.mxu0 0.0
    %933 = vmatmul.mubr.f32.gmra.mxu0 %v821
    %v934 = vpop.f32.mrf.mxu0
    %v935 = vadd.f32 %v742, %v934
    %v936 = vpop.f32.mrf.mxu0
    %937 = vmatprep.mubr.f32.mxu0 0.0
    %938 = vmatmul.mubr.f32.gmra.mxu0 %v824
    %v939 = vpop.f32.mrf.mxu0
    %v940 = vadd.f32 %v747, %v939
    %v941 = vpop.f32.mrf.mxu0
    %942 = vmatprep.mubr.f32.mxu0 0.0
    %943 = vmatmul.mubr.f32.gmra.mxu0 %v827
    %v944 = vpop.f32.mrf.mxu0
    %v945 = vadd.f32 %v752, %v944
    %v946 = vpop.f32.mrf.mxu0
    %947 = vmatprep.mubr.f32.mxu0 0.0
    %948 = vmatmul.mubr.f32.gmra.mxu0 %v830
    %v949 = vpop.f32.mrf.mxu0
    %v950 = vadd.f32 %v757, %v949
    %v951 = vpop.f32.mrf.mxu0
    %952 = vmatprep.mubr.f32.mxu0 0.0
    %953 = vmatmul.mubr.f32.gmra.mxu0 %v833
    %v954 = vpop.f32.mrf.mxu0
    %v955 = vadd.f32 %v762, %v954
    %v956 = vpop.f32.mrf.mxu0
    %957 = vmatprep.mubr.f32.mxu0 0.0
    %958 = vmatmul.mubr.f32.gmra.mxu0 %v836
    %v959 = vpop.f32.mrf.mxu0
    %v960 = vadd.f32 %v767, %v959
    %v961 = vpop.f32.mrf.mxu0
    %962 = vmatprep.mubr.f32.mxu0 0.0
    %963 = vmatmul.mubr.f32.gmra.mxu0 %v839
    %v964 = vpop.f32.mrf.mxu0
    %v965 = vadd.f32 %v772, %v964
    %v966 = vpop.f32.mrf.mxu0
    %967 = vmatprep.mubr.f32.mxu0 0.0
    %968 = vmatmul.mubr.f32.gmra.mxu0 %v842
    %v969 = vpop.f32.mrf.mxu0
    %v970 = vadd.f32 %v777, %v969
    %v971 = vpop.f32.mrf.mxu0
    %972 = vmatprep.mubr.f32.mxu0 0.0
    %973 = vmatmul.mubr.f32.gmra.mxu0 %v845
    %v974 = vpop.f32.mrf.mxu0
    %v975 = vadd.f32 %v782, %v974
    %v976 = vpop.f32.mrf.mxu0
    %977 = vmatprep.mubr.f32.mxu0 0.0
    %978 = vmatmul.mubr.f32.gmra.mxu0 %v848
    %v979 = vpop.f32.mrf.mxu0
    %v980 = vadd.f32 %v787, %v979
    %v981 = vpop.f32.mrf.mxu0
    %982 = vmatprep.mubr.f32.mxu0 0.0
    %983 = vmatmul.mubr.f32.gmra.mxu0 %v851
    %v984 = vpop.f32.mrf.mxu0
    %v985 = vadd.f32 %v792, %v984
    %v986 = vpop.f32.mrf.mxu0
    %987 = vmatprep.mubr.f32.mxu0 0.0
    %988 = vmatmul.mubr.f32.gmra.mxu0 %v854
    %v989 = vpop.f32.mrf.mxu0
    %v990 = vadd.f32 %v797, %v989
    %v991 = vpop.f32.mrf.mxu0
    %992 = vmatprep.mubr.f32.mxu0 0.0
    %993 = vmatmul.mubr.f32.gmra.mxu0 %v857
    %v994 = vpop.f32.mrf.mxu0
    %v995 = vadd.f32 %v802, %v994
    %v996 = vpop.f32.mrf.mxu0
    %997 = vmatprep.mubr.f32.mxu0 0.0
    %998 = vmatmul.mubr.f32.gmra.mxu0 %v860
    %v999 = vpop.f32.mrf.mxu0
    %v1000 = vadd.f32 %v807, %v999
    %v1001 = vpop.f32.mrf.mxu0
    %1002 = vmatprep.mubr.f32.mxu0 0.0
    %1003 = vmatmul.mubr.f32.gmra.mxu0 %v863
    %v1004 = vpop.f32.mrf.mxu0
    %v1005 = vadd.f32 %v812, %v1004
    %v1006 = vpop.f32.mrf.mxu0
    %1007 = vmatprep.mubr.f32.mxu0 0.0
    %1008 = vmatmul.mubr.f32.gmra.mxu0 %v866
    %v1009 = vpop.f32.mrf.mxu0
    %v1010 = vadd.f32 %v817, %v1009
    %v1011 = vpop.f32.mrf.mxu0
    %1012 = vdwg.mxu0
    %v1013 = vld [vmem:[#allocation2 + $0x2] sm:$0xff]
    %v1014 = vld [vmem:[#allocation2 + $0xa] sm:$0xff]
    %v1015 = vld [vmem:[#allocation2 + $0x1a] sm:$0xff]
    %v1016 = vld [vmem:[#allocation2 + $0x22] sm:$0xff]
    %v1017 = vld [vmem:[#allocation2 + $0x32] sm:$0xff]
    %v1018 = vld [vmem:[#allocation2 + $0x3a] sm:$0xff]
    %v1019 = vld [vmem:[#allocation2 + $0x4a] sm:$0xff]
    %v1020 = vld [vmem:[#allocation2 + $0x52] sm:$0xff]
    %v1021 = vld [vmem:[#allocation2 + $0x62] sm:$0xff]
    %v1022 = vld [vmem:[#allocation2 + $0x6a] sm:$0xff]
    %v1023 = vld [vmem:[#allocation2 + $0x7a] sm:$0xff]
    %v1024 = vld [vmem:[#allocation2 + $0x82] sm:$0xff]
    %v1025 = vld [vmem:[#allocation2 + $0x92] sm:$0xff]
    %v1026 = vld [vmem:[#allocation2 + $0x9a] sm:$0xff]
    %v1027 = vld [vmem:[#allocation2 + $0xaa] sm:$0xff]
    %v1028 = vld [vmem:[#allocation2 + $0xb2] sm:$0xff]
    %v1030 = vsel %vm556, %v1013, 0
    %v1033 = vsel %vm556, %v1014, 0
    %v1036 = vsel %vm556, %v1015, 0
    %v1039 = vsel %vm556, %v1016, 0
    %v1042 = vsel %vm556, %v1017, 0
    %v1045 = vsel %vm556, %v1018, 0
    %v1048 = vsel %vm556, %v1019, 0
    %v1051 = vsel %vm556, %v1020, 0
    %v1054 = vsel %vm556, %v1021, 0
    %v1057 = vsel %vm556, %v1022, 0
    %v1060 = vsel %vm556, %v1023, 0
    %v1063 = vsel %vm556, %v1024, 0
    %v1066 = vsel %vm556, %v1025, 0
    %v1069 = vsel %vm556, %v1026, 0
    %v1072 = vsel %vm556, %v1027, 0
    %v1075 = vsel %vm556, %v1028, 0
    %1077 = vmatprep.subr.mxu0 0.0
    %1078 = vmatpush1.msra.mxu0 0.0
    %1079 = vmatprep.subr.mxu0 0.0
    %1080 = vmatpush1.msra.mxu0 0.0
    %1081 = vmatprep.subr.mxu0 0.0
    %1082 = vmatpush1.msra.mxu0 0.0
    %1083 = vmatprep.subr.mxu0 0.0
    %1084 = vmatpush1.msra.mxu0 0.0
    %1085 = vmatprep.subr.mxu0 0.0
    %1086 = vmatpush1.msra.mxu0 0.0
    %1087 = vmatprep.subr.mxu0 0.0
    %1088 = vmatpush1.msra.mxu0 0.0
    %1089 = vmatprep.subr.mxu0 0.0
    %1090 = vmatpush1.msra.mxu0 0.0
    %1091 = vmatprep.subr.mxu0 0.0
    %1092 = vmatpush1.msra.mxu0 0.0
    %1093 = vmatprep.subr.mxu0 0.0
    %1094 = vmatpush1.msra.mxu0 0.0
    %1095 = vmatprep.subr.mxu0 0.0
    %1096 = vmatpush1.msra.mxu0 0.0
    %1097 = vmatprep.subr.mxu0 0.0
    %1098 = vmatpush1.msra.mxu0 0.0
    %1099 = vmatprep.subr.mxu0 0.0
    %1100 = vmatpush1.msra.mxu0 0.0
    %1101 = vmatprep.subr.mxu0 0.0
    %1102 = vmatpush1.msra.mxu0 %v593
    %1103 = vmatprep.subr.mxu0 0.0
    %1104 = vmatpush1.msra.mxu0 %v592
    %1105 = vmatprep.subr.mxu0 0.0
    %1106 = vmatpush1.msra.mxu0 %v591
    %1107 = vmatprep.subr.mxu0 0.0
    %1108 = vmatpush1.msra.mxu0 %v590
    %1109 = vmatprep.subr.mxu0 0.0
    %1110 = vmatpush2.msra.mxu0 0.0
    %1111 = vmatprep.subr.mxu0 0.0
    %1112 = vmatpush2.msra.mxu0 0.0
    %1113 = vmatprep.subr.mxu0 0.0
    %1114 = vmatpush2.msra.mxu0 0.0
    %1115 = vmatprep.subr.mxu0 0.0
    %1116 = vmatpush2.msra.mxu0 0.0
    %1117 = vmatprep.subr.mxu0 0.0
    %1118 = vmatpush2.msra.mxu0 0.0
    %1119 = vmatprep.subr.mxu0 0.0
    %1120 = vmatpush2.msra.mxu0 0.0
    %1121 = vmatprep.subr.mxu0 0.0
    %1122 = vmatpush2.msra.mxu0 0.0
    %1123 = vmatprep.subr.mxu0 0.0
    %1124 = vmatpush2.msra.mxu0 0.0
    %1125 = vmatprep.subr.mxu0 0.0
    %1126 = vmatpush2.msra.mxu0 0.0
    %1127 = vmatprep.subr.mxu0 0.0
    %1128 = vmatpush2.msra.mxu0 0.0
    %1129 = vmatprep.subr.mxu0 0.0
    %1130 = vmatpush2.msra.mxu0 0.0
    %1131 = vmatprep.subr.mxu0 0.0
    %1132 = vmatpush2.msra.mxu0 0.0
    %1133 = vmatprep.subr.mxu0 0.0
    %1134 = vmatpush2.msra.mxu0 0.0
    %1135 = vmatprep.subr.mxu0 0.0
    %1136 = vmatpush2.msra.mxu0 0.0
    %1137 = vmatprep.subr.mxu0 0.0
    %1138 = vmatpush2.msra.mxu0 0.0
    %1139 = vmatprep.subr.mxu0 0.0
    %1140 = vmatpush2.msra.mxu0 0.0
    %1141 = vmatprep.mubr.f32.mxu0 0.0
    %1142 = vmatmul.mubr.f32.gmra.mxu0 %v1030
    %v1143 = vpop.f32.mrf.mxu0
    %v1144 = vadd.f32 0.0, %v1143
    %v1145 = vpop.f32.mrf.mxu0
    %1146 = vmatprep.mubr.f32.mxu0 0.0
    %1147 = vmatmul.mubr.f32.gmra.mxu0 %v1033
    %v1148 = vpop.f32.mrf.mxu0
    %v1149 = vadd.f32 0.0, %v1148
    %v1150 = vpop.f32.mrf.mxu0
    %1151 = vmatprep.mubr.f32.mxu0 0.0
    %1152 = vmatmul.mubr.f32.gmra.mxu0 %v1036
    %v1153 = vpop.f32.mrf.mxu0
    %v1154 = vadd.f32 0.0, %v1153
    %v1155 = vpop.f32.mrf.mxu0
    %1156 = vmatprep.mubr.f32.mxu0 0.0
    %1157 = vmatmul.mubr.f32.gmra.mxu0 %v1039
    %v1158 = vpop.f32.mrf.mxu0
    %v1159 = vadd.f32 0.0, %v1158
    %v1160 = vpop.f32.mrf.mxu0
    %1161 = vmatprep.mubr.f32.mxu0 0.0
    %1162 = vmatmul.mubr.f32.gmra.mxu0 %v1042
    %v1163 = vpop.f32.mrf.mxu0
    %v1164 = vadd.f32 0.0, %v1163
    %v1165 = vpop.f32.mrf.mxu0
    %1166 = vmatprep.mubr.f32.mxu0 0.0
    %1167 = vmatmul.mubr.f32.gmra.mxu0 %v1045
    %v1168 = vpop.f32.mrf.mxu0
    %v1169 = vadd.f32 0.0, %v1168
    %v1170 = vpop.f32.mrf.mxu0
    %1171 = vmatprep.mubr.f32.mxu0 0.0
    %1172 = vmatmul.mubr.f32.gmra.mxu0 %v1048
    %v1173 = vpop.f32.mrf.mxu0
    %v1174 = vadd.f32 0.0, %v1173
    %v1175 = vpop.f32.mrf.mxu0
    %1176 = vmatprep.mubr.f32.mxu0 0.0
    %1177 = vmatmul.mubr.f32.gmra.mxu0 %v1051
    %v1178 = vpop.f32.mrf.mxu0
    %v1179 = vadd.f32 0.0, %v1178
    %v1180 = vpop.f32.mrf.mxu0
    %1181 = vmatprep.mubr.f32.mxu0 0.0
    %1182 = vmatmul.mubr.f32.gmra.mxu0 %v1054
    %v1183 = vpop.f32.mrf.mxu0
    %v1184 = vadd.f32 0.0, %v1183
    %v1185 = vpop.f32.mrf.mxu0
    %1186 = vmatprep.mubr.f32.mxu0 0.0
    %1187 = vmatmul.mubr.f32.gmra.mxu0 %v1057
    %v1188 = vpop.f32.mrf.mxu0
    %v1189 = vadd.f32 0.0, %v1188
    %v1190 = vpop.f32.mrf.mxu0
    %1191 = vmatprep.mubr.f32.mxu0 0.0
    %1192 = vmatmul.mubr.f32.gmra.mxu0 %v1060
    %v1193 = vpop.f32.mrf.mxu0
    %v1194 = vadd.f32 0.0, %v1193
    %v1195 = vpop.f32.mrf.mxu0
    %1196 = vmatprep.mubr.f32.mxu0 0.0
    %1197 = vmatmul.mubr.f32.gmra.mxu0 %v1063
    %v1198 = vpop.f32.mrf.mxu0
    %v1199 = vadd.f32 0.0, %v1198
    %v1200 = vpop.f32.mrf.mxu0
    %1201 = vmatprep.mubr.f32.mxu0 0.0
    %1202 = vmatmul.mubr.f32.gmra.mxu0 %v1066
    %v1203 = vpop.f32.mrf.mxu0
    %v1204 = vadd.f32 0.0, %v1203
    %v1205 = vpop.f32.mrf.mxu0
    %1206 = vmatprep.mubr.f32.mxu0 0.0
    %1207 = vmatmul.mubr.f32.gmra.mxu0 %v1069
    %v1208 = vpop.f32.mrf.mxu0
    %v1209 = vadd.f32 0.0, %v1208
    %v1210 = vpop.f32.mrf.mxu0
    %1211 = vmatprep.mubr.f32.mxu0 0.0
    %1212 = vmatmul.mubr.f32.gmra.mxu0 %v1072
    %v1213 = vpop.f32.mrf.mxu0
    %v1214 = vadd.f32 0.0, %v1213
    %v1215 = vpop.f32.mrf.mxu0
    %1216 = vmatprep.mubr.f32.mxu0 0.0
    %1217 = vmatmul.mubr.f32.gmra.mxu0 %v1075
    %v1218 = vpop.f32.mrf.mxu0
    %v1219 = vadd.f32 0.0, %v1218
    %v1220 = vpop.f32.mrf.mxu0
    %1221 = vdwg.mxu0
    %v1222 = vadd.f32 %v935, %v1144
    %v1223 = vadd.f32 %v940, %v1149
    %v1224 = vadd.f32 %v945, %v1154
    %v1225 = vadd.f32 %v950, %v1159
    %v1226 = vadd.f32 %v955, %v1164
    %v1227 = vadd.f32 %v960, %v1169
    %v1228 = vadd.f32 %v965, %v1174
    %v1229 = vadd.f32 %v970, %v1179
    %v1230 = vadd.f32 %v975, %v1184
    %v1231 = vadd.f32 %v980, %v1189
    %v1232 = vadd.f32 %v985, %v1194
    %v1233 = vadd.f32 %v990, %v1199
    %v1234 = vadd.f32 %v995, %v1204
    %v1235 = vadd.f32 %v1000, %v1209
    %v1236 = vadd.f32 %v1005, %v1214
    %v1237 = vadd.f32 %v1010, %v1219
    %v1239 = vlaneseq
    %v1240 = vshrl.u32 %v1239, 7
    %v1241 = vsub.s32 0, %v1240
    %v1242 = vrot.slane %v594, %v1241
    %v1244 = vadd.f32 %v1222, %v1242
    %v1245 = vadd.f32 %v1223, %v1242
    %v1246 = vadd.f32 %v1224, %v1242
    %v1247 = vadd.f32 %v1225, %v1242
    %v1248 = vadd.f32 %v1226, %v1242
    %v1249 = vadd.f32 %v1227, %v1242
    %v1250 = vadd.f32 %v1228, %v1242
    %v1251 = vadd.f32 %v1229, %v1242
    %v1252 = vadd.f32 %v1230, %v1242
    %v1253 = vadd.f32 %v1231, %v1242
    %v1254 = vadd.f32 %v1232, %v1242
    %v1255 = vadd.f32 %v1233, %v1242
    %v1256 = vadd.f32 %v1234, %v1242
    %v1257 = vadd.f32 %v1235, %v1242
    %v1258 = vadd.f32 %v1236, %v1242
    %v1259 = vadd.f32 %v1237, %v1242
    %v1260 = vmax.f32 %v1244, 0.0
    %v1261 = vmax.f32 %v1245, 0.0
    %v1262 = vmax.f32 %v1246, 0.0
    %v1263 = vmax.f32 %v1247, 0.0
    %v1264 = vmax.f32 %v1248, 0.0
    %v1265 = vmax.f32 %v1249, 0.0
    %v1266 = vmax.f32 %v1250, 0.0
    %v1267 = vmax.f32 %v1251, 0.0
    %v1268 = vmax.f32 %v1252, 0.0
    %v1269 = vmax.f32 %v1253, 0.0
    %v1270 = vmax.f32 %v1254, 0.0
    %v1271 = vmax.f32 %v1255, 0.0
    %v1272 = vmax.f32 %v1256, 0.0
    %v1273 = vmax.f32 %v1257, 0.0
    %v1274 = vmax.f32 %v1258, 0.0
    %v1275 = vmax.f32 %v1259, 0.0
    %v1276 = vsel %vm556, %v1260, 0.0
    %v1277 = vsel %vm556, %v1261, 0.0
    %v1278 = vadd.f32 %v1276, %v1277
    %v1279 = vrot.slane %v1278, 4
    %v1280 = vadd.f32 %v1278, %v1279
    %v1281 = vrot.slane %v1280, 2
    %v1282 = vadd.f32 %v1280, %v1281
    %v1283 = vrot.slane %v1282, 1
    %v1284 = vadd.f32 %v1282, %v1283
    %v1285 = vsel %vm556, %v1262, 0.0
    %v1286 = vsel %vm556, %v1263, 0.0
    %v1287 = vadd.f32 %v1285, %v1286
    %v1288 = vrot.slane %v1287, 4
    %v1289 = vadd.f32 %v1287, %v1288
    %v1290 = vrot.slane %v1289, 2
    %v1291 = vadd.f32 %v1289, %v1290
    %v1292 = vrot.slane %v1291, 1
    %v1293 = vadd.f32 %v1291, %v1292
    %v1294 = vsel %vm556, %v1264, 0.0
    %v1295 = vsel %vm556, %v1265, 0.0
    %v1296 = vadd.f32 %v1294, %v1295
    %v1297 = vrot.slane %v1296, 4
    %v1298 = vadd.f32 %v1296, %v1297
    %v1299 = vrot.slane %v1298, 2
    %v1300 = vadd.f32 %v1298, %v1299
    %v1301 = vrot.slane %v1300, 1
    %v1302 = vadd.f32 %v1300, %v1301
    %v1303 = vsel %vm556, %v1266, 0.0
    %v1304 = vsel %vm556, %v1267, 0.0
    %v1305 = vadd.f32 %v1303, %v1304
    %v1306 = vrot.slane %v1305, 4
    %v1307 = vadd.f32 %v1305, %v1306
    %v1308 = vrot.slane %v1307, 2
    %v1309 = vadd.f32 %v1307, %v1308
    %v1310 = vrot.slane %v1309, 1
    %v1311 = vadd.f32 %v1309, %v1310
    %v1312 = vsel %vm556, %v1268, 0.0
    %v1313 = vsel %vm556, %v1269, 0.0
    %v1314 = vadd.f32 %v1312, %v1313
    %v1315 = vrot.slane %v1314, 4
    %v1316 = vadd.f32 %v1314, %v1315
    %v1317 = vrot.slane %v1316, 2
    %v1318 = vadd.f32 %v1316, %v1317
    %v1319 = vrot.slane %v1318, 1
    %v1320 = vadd.f32 %v1318, %v1319
    %v1321 = vsel %vm556, %v1270, 0.0
    %v1322 = vsel %vm556, %v1271, 0.0
    %v1323 = vadd.f32 %v1321, %v1322
    %v1324 = vrot.slane %v1323, 4
    %v1325 = vadd.f32 %v1323, %v1324
    %v1326 = vrot.slane %v1325, 2
    %v1327 = vadd.f32 %v1325, %v1326
    %v1328 = vrot.slane %v1327, 1
    %v1329 = vadd.f32 %v1327, %v1328
    %v1330 = vsel %vm556, %v1272, 0.0
    %v1331 = vsel %vm556, %v1273, 0.0
    %v1332 = vadd.f32 %v1330, %v1331
    %v1333 = vrot.slane %v1332, 4
    %v1334 = vadd.f32 %v1332, %v1333
    %v1335 = vrot.slane %v1334, 2
    %v1336 = vadd.f32 %v1334, %v1335
    %v1337 = vrot.slane %v1336, 1
    %v1338 = vadd.f32 %v1336, %v1337
    %v1339 = vsel %vm556, %v1274, 0.0
    %v1340 = vsel %vm556, %v1275, 0.0
    %v1341 = vadd.f32 %v1339, %v1340
    %v1342 = vrot.slane %v1341, 4
    %v1343 = vadd.f32 %v1341, %v1342
    %v1344 = vrot.slane %v1343, 2
    %v1345 = vadd.f32 %v1343, %v1344
    %v1346 = vrot.slane %v1345, 1
    %v1347 = vadd.f32 %v1345, %v1346
    %v1348 = vmul.f32 %v1284, 0.0625
    %v1349 = vmul.f32 %v1293, 0.0625
    %v1350 = vmul.f32 %v1302, 0.0625
    %v1351 = vmul.f32 %v1311, 0.0625
    %v1352 = vmul.f32 %v1320, 0.0625
    %v1353 = vmul.f32 %v1329, 0.0625
    %v1354 = vmul.f32 %v1338, 0.0625
    %v1355 = vmul.f32 %v1347, 0.0625
    %vm1364 = vcmask 1041409
    %v1365 = vsel %vm1364, %v1349, %v1348
    %vm1366 = vcmask 1042434
    %v1367 = vsel %vm1366, %v1350, %v1365
    %vm1368 = vcmask 1043459
    %v1369 = vsel %vm1368, %v1351, %v1367
    %vm1370 = vcmask 1044484
    %v1371 = vsel %vm1370, %v1352, %v1369
    %vm1372 = vcmask 1045509
    %v1373 = vsel %vm1372, %v1353, %v1371
    %vm1374 = vcmask 1046534
    %v1375 = vsel %vm1374, %v1354, %v1373
    %vm1376 = vcmask 1047559
    %v1377 = vsel %vm1376, %v1355, %v1375
    %1379 = vst.msk [vmem:[#allocation3] sm:$0xff] %vm556, %v1377
    // Predicated region
    $region22: #{tpu_custom_call.1} parent=1 // pred_check
      _
    $region23: #{tpu_custom_call.1} parent=1 // pred_check_branch
      %1381 = sbr.rel (0) target = $region25
    $region24: #{tpu_custom_call.1} parent=1 // pred_region
      %s1383 = ssub.s32 128, 128
      %1384 = vsyncadd [#allocation4], %s1383
      %s1386 = sshll.u32 [#allocation3], 4
      %s1387 = int_to_ptr.vmem [resolvable:$true] %s1386
      %1389 = dma.vmem_to_hbm [thread:$0]  %s1387, 128, %s5, [#allocation4]
    $region25: #{tpu_custom_call.1} parent=1 // pred_fallthru
      _
    // Predicated region
    $region26: #{tpu_custom_call.1} parent=1 // pred_check
      _
    $region27: #{tpu_custom_call.1} parent=1 // pred_check_branch
      %1391 = sbr.rel (0) target = $region29
    $region28: #{tpu_custom_call.1} parent=1 // pred_region
      %1392 = dma.done [#allocation4], 128
    $region29: #{tpu_custom_call.1} parent=1 // pred_fallthru
      _
    %1393 = vsyncpa [#allocation4], 1

</llo_original>
